<compile_context>
chip_gen: v6e
topology: v6e:2x2x1
jax: 0.10.0
libtpu: 0.0.40
codegen_flags: <defaults>
</compile_context>

<pallas_src>
import functools

import numpy as np
import jax
import jax.numpy as jnp
from jax.experimental import pallas as pl
from jax.experimental.pallas import tpu as pltpu

IMAGENET_DEFAULT_MEAN = (0.485, 0.456, 0.406)
IMAGENET_DEFAULT_STD = (0.229, 0.224, 0.225)
_GRAY_W = (0.299, 0.587, 0.114)


# ----------------------------------------------------------------------------
# Host-side constant construction (plain numpy glue, cached across calls).
# ----------------------------------------------------------------------------
def bicubic_matrix(out_size: int, in_size: int, a: float = -0.75) -> np.ndarray:
    """PyTorch-style Keys bicubic (a=-0.75), half-pixel centers, edge-clamped."""
    def cubic(x):
        x = abs(float(x))
        if x <= 1.0:
            return (a + 2.0) * x**3 - (a + 3.0) * x**2 + 1.0
        if x < 2.0:
            return a * x**3 - 5.0 * a * x**2 + 8.0 * a * x - 4.0 * a
        return 0.0

    scale = in_size / out_size
    M = np.zeros((out_size, in_size), dtype=np.float32)
    for i in range(out_size):
        src = (i + 0.5) * scale - 0.5
        i0 = int(np.floor(src))
        t = src - i0
        for k in range(-1, 3):
            w = cubic(k - t)
            idx = min(max(i0 + k, 0), in_size - 1)
            M[i, idx] += w
    return M


@functools.lru_cache(maxsize=None)
def _resize_operators(t: int, h: int, w: int, ho: int, wo: int):
    """Cached (per shape) resize operators; uploaded once as jit constants."""
    rh = bicubic_matrix(ho, h)                                           # (Ho, Hi)
    # fold grayscale weights into the height operator -> (Ho, 3*Hi)
    rh_gray = np.concatenate([gw * rh for gw in _GRAY_W], axis=1).astype(np.float32)
    # block-diagonal per-frame width operator (transposed) -> (T*Wi, T*Wo)
    rw_t = np.kron(np.eye(t, dtype=np.float32), bicubic_matrix(wo, w).T).astype(np.float32)
    return rh_gray, rw_t


# ----------------------------------------------------------------------------
# Fused kernel: grayscale+bicubic resize (2 bf16 MXU matmuls) -> normal flow ->
# ImageNet normalize.  Single gridless invocation, everything VMEM-resident.
# ----------------------------------------------------------------------------
def fused_flow_kernel(x_ref, rhg_ref, rwt_ref, out_ref, *, wo: int):
    # x_ref  : (3*Hi, T*Wi)  f32   channels/rows stacked on sublanes, frames along lanes
    # rhg_ref: (Ho, 3*Hi)    bf16  grayscale-folded bicubic height operator
    # rwt_ref: (T*Wi, T*Wo)  bf16  block-diagonal bicubic width operator (transposed)
    # out_ref: (3, Ho, T*Wo) f32   normalized (u, v, |flow|); last frame's columns = don't-care

    # --- grayscale + separable bicubic resize: two bf16 MXU matmuls, f32 accumulation ---
    x16 = x_ref[...].astype(jnp.bfloat16)
    g = jnp.dot(rhg_ref[...], x16, preferred_element_type=jnp.float32)        # (Ho, T*Wi)
    r = jnp.dot(g.astype(jnp.bfloat16), rwt_ref[...],
                preferred_element_type=jnp.float32)                           # (Ho, T*Wo)

    ho, n = r.shape

    # --- d/dH: circular central difference over rows (XLU sublane rolls) ---
    iy = (pltpu.roll(r, ho - 1, 0) - pltpu.roll(r, 1, 0)) * 0.5

    # --- d/dW: circular central difference WITHIN each frame ---
    # Full-slab lane rolls (lane-dense, no relayout) + iota-select to fix the 2 boundary
    # columns of every frame (replaces the former dense 256x256 matmul operator).
    col = jax.lax.broadcasted_iota(jnp.int32, (ho, n), 1) % wo
    nxt = jnp.where(col == wo - 1, pltpu.roll(r, wo - 1, 1), pltpu.roll(r, n - 1, 1))
    prv = jnp.where(col == 0, pltpu.roll(r, n - (wo - 1), 1), pltpu.roll(r, 1, 1))
    ix = (nxt - prv) * 0.5

    # --- temporal difference: frame f+1 minus frame f at the same pixel (full width) ---
    it = pltpu.roll(r, n - wo, 1) - r

    # --- gradient-based normal flow (all f32: v5e VPU/EUP have no bf16) ---
    inv = pl.reciprocal(ix * ix + iy * iy + 1e-6, approx=True)                # EUP slot
    u = -(ix * it) * inv
    v = -(iy * it) * inv
    mag = jnp.sqrt(u * u + v * v)

    # --- fused ImageNet normalize, lane-dense stores ---
    m, s = IMAGENET_DEFAULT_MEAN, IMAGENET_DEFAULT_STD
    out_ref[0] = (u - m[0]) * (1.0 / s[0])
    out_ref[1] = (v - m[1]) * (1.0 / s[1])
    out_ref[2] = (mag - m[2]) * (1.0 / s[2])


# ----------------------------------------------------------------------------
# Full forward: CASME2OpticalTransform(is_train=False).forward(x)
# ----------------------------------------------------------------------------
@functools.partial(jax.jit, static_argnames=("input_size",))
def casme2_optical_transform(x: jax.Array, input_size=(32, 32)) -> jax.Array:
    # x: (T, 3, H, W) float32 in [0, 1]  (ImglistToTensor output)
    t, c, h, w = x.shape
    assert c == 3, "CASME2OpticalTransform expects RGB frames"
    ho, wo = input_size

    # layout plumbing (glue): (T, C, H, W) -> (C*H, T*W) frame slab, frames along lanes
    x_slab = jnp.transpose(x, (1, 2, 0, 3)).reshape(c * h, t * w)

    rh_gray_np, rwt_np = _resize_operators(t, h, w, ho, wo)
    rh_gray = jnp.asarray(rh_gray_np, dtype=jnp.bfloat16)   # jit constants (no per-call H2D)
    rwt = jnp.asarray(rwt_np, dtype=jnp.bfloat16)

    out_slab = pl.pallas_call(
        functools.partial(fused_flow_kernel, wo=wo),
        out_shape=jax.ShapeDtypeStruct((3, ho, t * wo), jnp.float32),
        in_specs=[pl.BlockSpec(memory_space=pltpu.MemorySpace.VMEM)] * 3,
        out_specs=pl.BlockSpec(memory_space=pltpu.MemorySpace.VMEM),
        compiler_params=pltpu.CompilerParams(vmem_limit_bytes=16 * 1024 * 1024),
    )(x_slab, rh_gray, rwt)

    # drop the last frame's don't-care columns; (3, Ho, (T-1)*Wo) -> (C, T-1, Ho, Wo)
    out = out_slab[:, :, : (t - 1) * wo].reshape(3, ho, t - 1, wo)
    return jnp.transpose(out, (0, 2, 1, 3))                 # == ConvertBCHWtoCBHW layout


if __name__ == "__main__":
    key = jax.random.PRNGKey(0)
    T_, C, H, W = 8, 3, 16, 16                        # small, CASME2-like frame stack
    x = jax.random.uniform(key, (T_, C, H, W), dtype=jnp.float32)

    out = casme2_optical_transform(x, input_size=(32, 32))
    out = jax.block_until_ready(out)

    assert out.shape == (3, T_ - 1, 32, 32), out.shape
    assert out.dtype == jnp.float32
    assert bool(jnp.all(jnp.isfinite(out)))
    print("KERNEL_OK")
</pallas_src>

<mosaic_0001>
module attributes {stable_mosaic.version = 11 : i64} {
  func.func @fused_flow_kernel(%arg0: memref<48x128xf32, #tpu.memory_space<vmem>>, %arg1: memref<32x48xbf16, #tpu.memory_space<vmem>>, %arg2: memref<128x256xbf16, #tpu.memory_space<vmem>>, %arg3: memref<3x32x256xf32, #tpu.memory_space<vmem>>) attributes {dimension_semantics = [], scalar_prefetch = 0 : i64, scratch_operands = 0 : i64, tpu.core_type = #tpu.core_type<tc>} {
    %c0 = arith.constant 0 : index
    %c0_0 = arith.constant 0 : index
    %0 = vector.load %arg0[%c0, %c0_0] : memref<48x128xf32, #tpu.memory_space<vmem>>, vector<48x128xf32>
    %1 = arith.truncf %0 : vector<48x128xf32> to vector<48x128xbf16>
    %c0_1 = arith.constant 0 : index
    %c0_2 = arith.constant 0 : index
    %2 = vector.load %arg1[%c0_1, %c0_2] : memref<32x48xbf16, #tpu.memory_space<vmem>>, vector<32x48xbf16>
    %cst = arith.constant dense<0.000000e+00> : vector<32x128xf32>
    %3 = tpu.matmul %2, %1, %cst {dimension_numbers = #tpu.dot_dimension_numbers<[1], [0], [0], [1], [0, 0, 1, 1], [], []>} : vector<32x48xbf16>, vector<48x128xbf16>, vector<32x128xf32> -> vector<32x128xf32>
    %4 = arith.truncf %3 : vector<32x128xf32> to vector<32x128xbf16>
    %c0_3 = arith.constant 0 : index
    %c0_4 = arith.constant 0 : index
    %5 = vector.load %arg2[%c0_3, %c0_4] : memref<128x256xbf16, #tpu.memory_space<vmem>>, vector<128x256xbf16>
    %cst_5 = arith.constant dense<0.000000e+00> : vector<32x256xf32>
    %6 = tpu.matmul %4, %5, %cst_5 {dimension_numbers = #tpu.dot_dimension_numbers<[1], [0], [0], [1], [0, 0, 1, 1], [], []>} : vector<32x128xbf16>, vector<128x256xbf16>, vector<32x256xf32> -> vector<32x256xf32>
    %c31_i32 = arith.constant 31 : i32
    %7 = tpu.dynamic_rotate %6 by %c31_i32 dim 0 : vector<32x256xf32>, i32 -> vector<32x256xf32>
    %c1_i32 = arith.constant 1 : i32
    %8 = tpu.dynamic_rotate %6 by %c1_i32 dim 0 : vector<32x256xf32>, i32 -> vector<32x256xf32>
    %9 = arith.subf %7, %8 : vector<32x256xf32>
    %cst_6 = arith.constant 5.000000e-01 : f32
    %10 = vector.broadcast %cst_6 : f32 to vector<32x256xf32>
    %11 = arith.mulf %9, %10 : vector<32x256xf32>
    %12 = tpu.iota {dimensions = array<i32: 1>} : vector<32x256xi32>
    %c32_i32 = arith.constant 32 : i32
    %c0_i32 = arith.constant 0 : i32
    %13 = arith.cmpi eq, %c32_i32, %c0_i32 : i32
    %c1_i32_7 = arith.constant 1 : i32
    %14 = arith.select %13, %c1_i32_7, %c32_i32 : i32
    %15 = vector.broadcast %14 : i32 to vector<32x256xi32>
    %16 = arith.remsi %12, %15 : vector<32x256xi32>
    %c0_i32_8 = arith.constant 0 : i32
    %17 = vector.broadcast %c0_i32_8 : i32 to vector<32x256xi32>
    %18 = arith.cmpi ne, %16, %17 : vector<32x256xi32>
    %c0_i32_9 = arith.constant 0 : i32
    %19 = vector.broadcast %c0_i32_9 : i32 to vector<32x256xi32>
    %20 = arith.cmpi slt, %16, %19 : vector<32x256xi32>
    %c0_i32_10 = arith.constant 0 : i32
    %21 = arith.cmpi slt, %14, %c0_i32_10 : i32
    %22 = vector.broadcast %21 : i1 to vector<32x256xi1>
    %23 = vector.broadcast %22 : vector<32x256xi1> to vector<32x256xi1>
    %24 = arith.xori %20, %23 : vector<32x256xi1>
    %25 = arith.andi %24, %18 : vector<32x256xi1>
    %26 = vector.broadcast %14 : i32 to vector<32x256xi32>
    %27 = arith.addi %16, %26 : vector<32x256xi32>
    %28 = arith.select %25, %27, %16 : vector<32x256xi1>, vector<32x256xi32>
    %c31_i32_11 = arith.constant 31 : i32
    %29 = vector.broadcast %c31_i32_11 : i32 to vector<32x256xi32>
    %30 = arith.cmpi eq, %28, %29 : vector<32x256xi32>
    %c31_i32_12 = arith.constant 31 : i32
    %31 = tpu.dynamic_rotate %6 by %c31_i32_12 dim 1 : vector<32x256xf32>, i32 -> vector<32x256xf32>
    %c255_i32 = arith.constant 255 : i32
    %32 = tpu.dynamic_rotate %6 by %c255_i32 dim 1 : vector<32x256xf32>, i32 -> vector<32x256xf32>
    %33 = arith.select %30, %31, %32 : vector<32x256xi1>, vector<32x256xf32>
    %c0_i32_13 = arith.constant 0 : i32
    %34 = vector.broadcast %c0_i32_13 : i32 to vector<32x256xi32>
    %35 = arith.cmpi eq, %28, %34 : vector<32x256xi32>
    %c225_i32 = arith.constant 225 : i32
    %36 = tpu.dynamic_rotate %6 by %c225_i32 dim 1 : vector<32x256xf32>, i32 -> vector<32x256xf32>
    %c1_i32_14 = arith.constant 1 : i32
    %37 = tpu.dynamic_rotate %6 by %c1_i32_14 dim 1 : vector<32x256xf32>, i32 -> vector<32x256xf32>
    %38 = arith.select %35, %36, %37 : vector<32x256xi1>, vector<32x256xf32>
    %39 = arith.subf %33, %38 : vector<32x256xf32>
    %cst_15 = arith.constant 5.000000e-01 : f32
    %40 = vector.broadcast %cst_15 : f32 to vector<32x256xf32>
    %41 = arith.mulf %39, %40 : vector<32x256xf32>
    %c224_i32 = arith.constant 224 : i32
    %42 = tpu.dynamic_rotate %6 by %c224_i32 dim 1 : vector<32x256xf32>, i32 -> vector<32x256xf32>
    %43 = arith.subf %42, %6 : vector<32x256xf32>
    %44 = arith.mulf %41, %41 : vector<32x256xf32>
    %45 = arith.mulf %11, %11 : vector<32x256xf32>
    %46 = arith.addf %44, %45 : vector<32x256xf32>
    %cst_16 = arith.constant 9.99999997E-7 : f32
    %47 = vector.broadcast %cst_16 : f32 to vector<32x256xf32>
    %48 = arith.addf %46, %47 : vector<32x256xf32>
    %49 = tpu.reciprocal %48 {approx = true} : vector<32x256xf32> -> vector<32x256xf32>
    %50 = arith.mulf %41, %43 : vector<32x256xf32>
    %cst_17 = arith.constant 0.000000e+00 : f32
    %51 = vector.broadcast %cst_17 : f32 to vector<32x256xf32>
    %52 = arith.subf %51, %50 : vector<32x256xf32>
    %53 = arith.mulf %52, %49 : vector<32x256xf32>
    %54 = arith.mulf %11, %43 : vector<32x256xf32>
    %cst_18 = arith.constant 0.000000e+00 : f32
    %55 = vector.broadcast %cst_18 : f32 to vector<32x256xf32>
    %56 = arith.subf %55, %54 : vector<32x256xf32>
    %57 = arith.mulf %56, %49 : vector<32x256xf32>
    %58 = arith.mulf %53, %53 : vector<32x256xf32>
    %59 = arith.mulf %57, %57 : vector<32x256xf32>
    %60 = arith.addf %58, %59 : vector<32x256xf32>
    %61 = math.sqrt %60 : vector<32x256xf32>
    %cst_19 = arith.constant 4.850000e-01 : f32
    %62 = vector.broadcast %cst_19 : f32 to vector<32x256xf32>
    %63 = arith.subf %53, %62 : vector<32x256xf32>
    %cst_20 = arith.constant 4.36681223 : f32
    %64 = vector.broadcast %cst_20 : f32 to vector<32x256xf32>
    %65 = arith.mulf %63, %64 : vector<32x256xf32>
    %c0_21 = arith.constant 0 : index
    %c0_22 = arith.constant 0 : index
    %c0_23 = arith.constant 0 : index
    %66 = vector.load %arg3[%c0_21, %c0_22, %c0_23] : memref<3x32x256xf32, #tpu.memory_space<vmem>>, vector<1x32x256xf32>
    %67 = vector.shape_cast %66 : vector<1x32x256xf32> to vector<32x256xf32>
    %68 = vector.shape_cast %65 : vector<32x256xf32> to vector<1x32x256xf32>
    tpu.vector_store %arg3[%c0_21, %c0_22, %c0_23], %68 {strides = array<i32>} : memref<3x32x256xf32, #tpu.memory_space<vmem>>, vector<1x32x256xf32>,
    %cst_24 = arith.constant 4.560000e-01 : f32
    %69 = vector.broadcast %cst_24 : f32 to vector<32x256xf32>
    %70 = arith.subf %57, %69 : vector<32x256xf32>
    %cst_25 = arith.constant 4.46428585 : f32
    %71 = vector.broadcast %cst_25 : f32 to vector<32x256xf32>
    %72 = arith.mulf %70, %71 : vector<32x256xf32>
    %c1 = arith.constant 1 : index
    %c0_26 = arith.constant 0 : index
    %c0_27 = arith.constant 0 : index
    %73 = vector.load %arg3[%c1, %c0_26, %c0_27] : memref<3x32x256xf32, #tpu.memory_space<vmem>>, vector<1x32x256xf32>
    %74 = vector.shape_cast %73 : vector<1x32x256xf32> to vector<32x256xf32>
    %75 = vector.shape_cast %72 : vector<32x256xf32> to vector<1x32x256xf32>
    tpu.vector_store %arg3[%c1, %c0_26, %c0_27], %75 {strides = array<i32>} : memref<3x32x256xf32, #tpu.memory_space<vmem>>, vector<1x32x256xf32>,
    %cst_28 = arith.constant 4.060000e-01 : f32
    %76 = vector.broadcast %cst_28 : f32 to vector<32x256xf32>
    %77 = arith.subf %61, %76 : vector<32x256xf32>
    %cst_29 = arith.constant 4.44444466 : f32
    %78 = vector.broadcast %cst_29 : f32 to vector<32x256xf32>
    %79 = arith.mulf %77, %78 : vector<32x256xf32>
    %c2 = arith.constant 2 : index
    %c0_30 = arith.constant 0 : index
    %c0_31 = arith.constant 0 : index
    %80 = vector.load %arg3[%c2, %c0_30, %c0_31] : memref<3x32x256xf32, #tpu.memory_space<vmem>>, vector<1x32x256xf32>
    %81 = vector.shape_cast %80 : vector<1x32x256xf32> to vector<32x256xf32>
    %82 = vector.shape_cast %79 : vector<32x256xf32> to vector<1x32x256xf32>
    tpu.vector_store %arg3[%c2, %c0_30, %c0_31], %82 {strides = array<i32>} : memref<3x32x256xf32, #tpu.memory_space<vmem>>, vector<1x32x256xf32>,
    return
  }
}

</mosaic_0001>

<llo_original>
// kernel: casme2_optical_transform.1
$region0: #{casme2_optical_transform.1}
  #allocation0 [shape = 'u32[]', space=smem, size = 0x4, offset = 0x4, fixed_abs, tag = 'smem constant byte address 0x4 - core index']
  #allocation1 [shape = 'u32[144,128]{1,0:T(1,128)}', space=vmem, size = 0x12000, scoped, tag = 'internal scratch']
  %s0 = inlined_call_operand.vmem [shape: f32[48,128], index: 0, kind: input, shape index: {}]
  %s1 = inlined_call_operand.vmem [shape: bf16[32,48], index: 1, kind: input, shape index: {}]
  %s2 = inlined_call_operand.vmem [shape: bf16[128,256], index: 2, kind: input, shape index: {}]
  %s3 = inlined_call_operand.vmem [shape: f32[3,32,256], index: 3, kind: output, shape index: {}]
  %s4 = sld [smem:[#allocation0]]
  $region22: #{casme2_optical_transform.1} parent=0
    _
  %s6 = ssub.s32 1, %s4
  %s7 = scalar_select 0, %s6, %s4
  // Predicated region
  $region2: #{casme2_optical_transform.1} parent=0 // pred_check
    _
  $region3: #{casme2_optical_transform.1} parent=0 // pred_check_branch
    %9 = sbr.rel (0) target = $region5
  $region4: #{casme2_optical_transform.1} parent=0 // pred_region
    _
  $region5: #{casme2_optical_transform.1} parent=0 // pred_fallthru
    _
  // Predicated region
  $region6: #{casme2_optical_transform.1} parent=0 // pred_check
    _
  $region7: #{casme2_optical_transform.1} parent=0 // pred_check_branch
    %11 = sbr.rel (0) target = $region9
  $region8: #{casme2_optical_transform.1} parent=0 // pred_region
    _
  $region9: #{casme2_optical_transform.1} parent=0 // pred_fallthru
    _
  // Predicated region
  $region10: #{casme2_optical_transform.1} parent=0 // pred_check
    _
  $region11: #{casme2_optical_transform.1} parent=0 // pred_check_branch
    %13 = sbr.rel (0) target = $region13
  $region12: #{casme2_optical_transform.1} parent=0 // pred_region
    _
  $region13: #{casme2_optical_transform.1} parent=0 // pred_fallthru
    _
  %v15 = vld [vmem:[%s0] sm:$0xff]
  %v16 = vld [vmem:[%s0 + $0x8] sm:$0xff]
  %v17 = vld [vmem:[%s0 + $0x10] sm:$0xff]
  %v18 = vld [vmem:[%s0 + $0x18] sm:$0xff]
  %v19 = vld [vmem:[%s0 + $0x20] sm:$0xff]
  %v20 = vld [vmem:[%s0 + $0x28] sm:$0xff]
  %v21 = vpack.c.bf16 %v16, %v15
  %v22 = vpack.c.bf16 %v18, %v17
  %v23 = vpack.c.bf16 %v20, %v19
  %v24 = vld [vmem:[%s1] sm:$0xf]
  %v25 = vld [vmem:[%s1 + $0x4] sm:$0xf]
  %v26 = vld [vmem:[%s1 + $0x8] sm:$0xf]
  %v27 = vld [vmem:[%s1 + $0xc] sm:$0xf]
  %v32 = vunpack.c.l.b16 %v24
  %v33 = vunpack.c.l.b16 %v25
  %v34 = vunpack.c.l.b16 %v26
  %v35 = vunpack.c.l.b16 %v27
  %v36 = vpack.c.b16 %v33, %v32
  %v37 = vpack.c.b16 %v35, %v34
  %vm38 = vcmask 392192
  %v40 = vsel %vm38, %v36, 0
  %v43 = vsel %vm38, %v37, 0
  %45 = vmatprep.subr.bf16.mxu0 0
  %46 = vmatpush1.bf16.msra.mxu0 0
  %47 = vmatprep.subr.bf16.mxu0 0
  %48 = vmatpush1.bf16.msra.mxu0 0
  %49 = vmatprep.subr.bf16.mxu0 0
  %50 = vmatpush1.bf16.msra.mxu0 0
  %51 = vmatprep.subr.bf16.mxu0 0
  %52 = vmatpush1.bf16.msra.mxu0 0
  %53 = vmatprep.subr.bf16.mxu0 0
  %54 = vmatpush1.bf16.msra.mxu0 0
  %55 = vmatprep.subr.bf16.mxu0 0
  %56 = vmatpush1.bf16.msra.mxu0 %v23
  %57 = vmatprep.subr.bf16.mxu0 0
  %58 = vmatpush1.bf16.msra.mxu0 %v22
  %59 = vmatprep.subr.bf16.mxu0 0
  %60 = vmatpush1.bf16.msra.mxu0 %v21
  %61 = vmatprep.subr.bf16.mxu0 0
  %62 = vmatpush2.bf16.msra.mxu0 0
  %63 = vmatprep.subr.bf16.mxu0 0
  %64 = vmatpush2.bf16.msra.mxu0 0
  %65 = vmatprep.subr.bf16.mxu0 0
  %66 = vmatpush2.bf16.msra.mxu0 0
  %67 = vmatprep.subr.bf16.mxu0 0
  %68 = vmatpush2.bf16.msra.mxu0 0
  %69 = vmatprep.subr.bf16.mxu0 0
  %70 = vmatpush2.bf16.msra.mxu0 0
  %71 = vmatprep.subr.bf16.mxu0 0
  %72 = vmatpush2.bf16.msra.mxu0 0
  %73 = vmatprep.subr.bf16.mxu0 0
  %74 = vmatpush2.bf16.msra.mxu0 0
  %75 = vmatprep.subr.bf16.mxu0 0
  %76 = vmatpush2.bf16.msra.mxu0 0
  %77 = vmatprep.mubr.bf16.mxu0 0
  %78 = vmatmul.mubr.bf16.gmra.mxu0 %v40
  %v79 = vpop.f32.mrf.mxu0
  %v80 = vadd.f32 0.0, %v79
  %v81 = vpop.f32.mrf.mxu0
  %v82 = vpop.f32.mrf.mxu0
  %v83 = vadd.f32 0.0, %v82
  %v84 = vpop.f32.mrf.mxu0
  %85 = vmatprep.mubr.bf16.mxu0 0
  %86 = vmatmul.mubr.bf16.gmra.mxu0 %v43
  %v87 = vpop.f32.mrf.mxu0
  %v88 = vadd.f32 0.0, %v87
  %v89 = vpop.f32.mrf.mxu0
  %v90 = vpop.f32.mrf.mxu0
  %v91 = vadd.f32 0.0, %v90
  %v92 = vpop.f32.mrf.mxu0
  %93 = vdwg.mxu0
  %v94 = vpack.c.bf16 %v83, %v80
  %v95 = vpack.c.bf16 %v91, %v88
  %v96 = vld [vmem:[%s2] sm:$0xff]
  %v97 = vld [vmem:[%s2 + $0x8] sm:$0xff]
  %v98 = vld [vmem:[%s2 + $0x10] sm:$0xff]
  %v99 = vld [vmem:[%s2 + $0x18] sm:$0xff]
  %v100 = vld [vmem:[%s2 + $0x20] sm:$0xff]
  %v101 = vld [vmem:[%s2 + $0x28] sm:$0xff]
  %v102 = vld [vmem:[%s2 + $0x30] sm:$0xff]
  %v103 = vld [vmem:[%s2 + $0x38] sm:$0xff]
  %v104 = vld [vmem:[%s2 + $0x40] sm:$0xff]
  %v105 = vld [vmem:[%s2 + $0x48] sm:$0xff]
  %v106 = vld [vmem:[%s2 + $0x50] sm:$0xff]
  %v107 = vld [vmem:[%s2 + $0x58] sm:$0xff]
  %v108 = vld [vmem:[%s2 + $0x60] sm:$0xff]
  %v109 = vld [vmem:[%s2 + $0x68] sm:$0xff]
  %v110 = vld [vmem:[%s2 + $0x70] sm:$0xff]
  %v111 = vld [vmem:[%s2 + $0x78] sm:$0xff]
  %v128 = vunpack.c.l.b16 %v96
  %v129 = vunpack.c.h.b16 %v96
  %v130 = vunpack.c.l.b16 %v97
  %v131 = vunpack.c.h.b16 %v97
  %v132 = vunpack.c.l.b16 %v98
  %v133 = vunpack.c.h.b16 %v98
  %v134 = vunpack.c.l.b16 %v99
  %v135 = vunpack.c.h.b16 %v99
  %v136 = vunpack.c.l.b16 %v100
  %v137 = vunpack.c.h.b16 %v100
  %v138 = vunpack.c.l.b16 %v101
  %v139 = vunpack.c.h.b16 %v101
  %v140 = vunpack.c.l.b16 %v102
  %v141 = vunpack.c.h.b16 %v102
  %v142 = vunpack.c.l.b16 %v103
  %v143 = vunpack.c.h.b16 %v103
  %v144 = vunpack.c.l.b16 %v104
  %v145 = vunpack.c.h.b16 %v104
  %v146 = vunpack.c.l.b16 %v105
  %v147 = vunpack.c.h.b16 %v105
  %v148 = vunpack.c.l.b16 %v106
  %v149 = vunpack.c.h.b16 %v106
  %v150 = vunpack.c.l.b16 %v107
  %v151 = vunpack.c.h.b16 %v107
  %v152 = vunpack.c.l.b16 %v108
  %v153 = vunpack.c.h.b16 %v108
  %v154 = vunpack.c.l.b16 %v109
  %v155 = vunpack.c.h.b16 %v109
  %v156 = vunpack.c.l.b16 %v110
  %v157 = vunpack.c.h.b16 %v110
  %v158 = vunpack.c.l.b16 %v111
  %v159 = vunpack.c.h.b16 %v111
  %v160 = vpack.c.b16 %v130, %v128
  %v161 = vpack.c.b16 %v131, %v129
  %v162 = vpack.c.b16 %v134, %v132
  %v163 = vpack.c.b16 %v135, %v133
  %v164 = vpack.c.b16 %v138, %v136
  %v165 = vpack.c.b16 %v139, %v137
  %v166 = vpack.c.b16 %v142, %v140
  %v167 = vpack.c.b16 %v143, %v141
  %v168 = vpack.c.b16 %v146, %v144
  %v169 = vpack.c.b16 %v147, %v145
  %v170 = vpack.c.b16 %v150, %v148
  %v171 = vpack.c.b16 %v151, %v149
  %v172 = vpack.c.b16 %v154, %v152
  %v173 = vpack.c.b16 %v155, %v153
  %v174 = vpack.c.b16 %v158, %v156
  %v175 = vpack.c.b16 %v159, %v157
  %192 = vmatprep.subr.bf16.mxu0 %v175
  %193 = vmatpush1.bf16.msra.mxu0 %v174
  %194 = vmatprep.subr.bf16.mxu0 %v173
  %195 = vmatpush1.bf16.msra.mxu0 %v172
  %196 = vmatprep.subr.bf16.mxu0 %v171
  %197 = vmatpush1.bf16.msra.mxu0 %v170
  %198 = vmatprep.subr.bf16.mxu0 %v169
  %199 = vmatpush1.bf16.msra.mxu0 %v168
  %200 = vmatprep.subr.bf16.mxu0 %v167
  %201 = vmatpush1.bf16.msra.mxu0 %v166
  %202 = vmatprep.subr.bf16.mxu0 %v165
  %203 = vmatpush1.bf16.msra.mxu0 %v164
  %204 = vmatprep.subr.bf16.mxu0 %v163
  %205 = vmatpush1.bf16.msra.mxu0 %v162
  %206 = vmatprep.subr.bf16.mxu0 %v161
  %207 = vmatpush1.bf16.msra.mxu0 %v160
  %208 = vmatprep.subr.bf16.mxu0 0
  %209 = vmatpush2.bf16.msra.mxu0 0
  %210 = vmatprep.subr.bf16.mxu0 0
  %211 = vmatpush2.bf16.msra.mxu0 0
  %212 = vmatprep.subr.bf16.mxu0 0
  %213 = vmatpush2.bf16.msra.mxu0 0
  %214 = vmatprep.subr.bf16.mxu0 0
  %215 = vmatpush2.bf16.msra.mxu0 0
  %216 = vmatprep.subr.bf16.mxu0 0
  %217 = vmatpush2.bf16.msra.mxu0 0
  %218 = vmatprep.subr.bf16.mxu0 0
  %219 = vmatpush2.bf16.msra.mxu0 0
  %220 = vmatprep.subr.bf16.mxu0 0
  %221 = vmatpush2.bf16.msra.mxu0 0
  %222 = vmatprep.subr.bf16.mxu0 0
  %223 = vmatpush2.bf16.msra.mxu0 0
  %224 = vmatprep.mubr.bf16.mxu0 0
  %225 = vmatmul.mubr.bf16.gmra.mxu0 %v94
  %v226 = vpop.f32.mrf.mxu0
  %v227 = vadd.f32 0.0, %v226
  %v228 = vpop.f32.mrf.mxu0
  %v229 = vadd.f32 0.0, %v228
  %v230 = vpop.f32.mrf.mxu0
  %v231 = vadd.f32 0.0, %v230
  %v232 = vpop.f32.mrf.mxu0
  %v233 = vadd.f32 0.0, %v232
  %234 = vmatprep.mubr.bf16.mxu0 0
  %235 = vmatmul.mubr.bf16.gmra.mxu0 %v95
  %v236 = vpop.f32.mrf.mxu0
  %v237 = vadd.f32 0.0, %v236
  %v238 = vpop.f32.mrf.mxu0
  %v239 = vadd.f32 0.0, %v238
  %v240 = vpop.f32.mrf.mxu0
  %v241 = vadd.f32 0.0, %v240
  %v242 = vpop.f32.mrf.mxu0
  %v243 = vadd.f32 0.0, %v242
  %244 = vdwg.mxu0
  %v245 = vrot.slane %v227, 1
  %v246 = vrot.slane %v229, 1
  %v247 = vrot.slane %v231, 1
  %v248 = vrot.slane %v233, 1
  %v249 = vrot.slane %v237, 1
  %v250 = vrot.slane %v239, 1
  %v251 = vrot.slane %v241, 1
  %v252 = vrot.slane %v243, 1
  %v253 = vlaneseq
  %v254 = vshrl.u32 %v253, 7
  %vm255 = vcmp.lt.s32.totalorder %v254, 7
  %v256 = vsel %vm255, %v249, %v251
  %v257 = vsel %vm255, %v250, %v252
  %v258 = vsel %vm255, %v247, %v249
  %v259 = vsel %vm255, %v248, %v250
  %v260 = vsel %vm255, %v245, %v247
  %v261 = vsel %vm255, %v246, %v248
  %v262 = vsel %vm255, %v251, %v245
  %v263 = vsel %vm255, %v252, %v246
  %v264 = vrot.slane %v227, 7
  %v265 = vrot.slane %v229, 7
  %v266 = vrot.slane %v231, 7
  %v267 = vrot.slane %v233, 7
  %v268 = vrot.slane %v237, 7
  %v269 = vrot.slane %v239, 7
  %v270 = vrot.slane %v241, 7
  %v271 = vrot.slane %v243, 7
  %vm272 = vcmp.lt.s32.totalorder %v254, 1
  %v273 = vsel %vm272, %v268, %v270
  %v274 = vsel %vm272, %v269, %v271
  %v275 = vsel %vm272, %v266, %v268
  %v276 = vsel %vm272, %v267, %v269
  %v277 = vsel %vm272, %v264, %v266
  %v278 = vsel %vm272, %v265, %v267
  %v279 = vsel %vm272, %v270, %v264
  %v280 = vsel %vm272, %v271, %v265
  %v281 = vsub.f32 %v260, %v279
  %v282 = vsub.f32 %v261, %v280
  %v283 = vsub.f32 %v258, %v277
  %v284 = vsub.f32 %v259, %v278
  %v285 = vsub.f32 %v256, %v275
  %v286 = vsub.f32 %v257, %v276
  %v287 = vsub.f32 %v262, %v273
  %v288 = vsub.f32 %v263, %v274
  %v289 = vmul.f32 %v281, 0.5
  %v290 = vmul.f32 %v282, 0.5
  %v291 = vmul.f32 %v283, 0.5
  %v292 = vmul.f32 %v284, 0.5
  %v293 = vmul.f32 %v285, 0.5
  %v294 = vmul.f32 %v286, 0.5
  %v295 = vmul.f32 %v287, 0.5
  %v296 = vmul.f32 %v288, 0.5
  %v297 = vlaneseq
  %v298 = vand.u32 %v297, 127
  %v299 = vadd.s32 %v298, 128
  %vm300 = vcmp.lt.s32.totalorder %v298, 0
  %v301 = vsub.s32 0, %v298
  %v302 = vsel %vm300, %v301, %v298
  %v303 = vshrl.u32 %v302, 5
  %v304 = vand.u32 %v302, 31
  %v305 = vsub.s32 0, %v304
  %v306 = vsel %vm300, %v305, %v304
  %vm307 = vcmp.lt.s32.totalorder %v299, 0
  %v308 = vsub.s32 0, %v299
  %v309 = vsel %vm307, %v308, %v299
  %v310 = vshrl.u32 %v309, 5
  %v311 = vand.u32 %v309, 31
  %v312 = vsub.s32 0, %v311
  %v313 = vsel %vm307, %v312, %v311
  %vm314 = vcmp.ne.s32.totalorder %v306, 0
  %vm315 = vcmp.ne.s32.totalorder %v313, 0
  %vm316 = vcmp.lt.s32.totalorder %v306, 0
  %vm317 = vcmp.lt.s32.totalorder %v313, 0
  %vm318 = vmand %vm316, %vm314
  %vm319 = vmand %vm317, %vm315
  %v320 = vadd.s32 %v306, 32
  %v321 = vadd.s32 %v313, 32
  %v322 = vsel %vm318, %v320, %v306
  %v323 = vsel %vm319, %v321, %v313
  %vm324 = vcmp.eq.s32.totalorder %v322, 31
  %vm325 = vcmp.eq.s32.totalorder %v323, 31
  %326 = vrot.lane.b32.xlu0 %v227, 31
  %v327 = vpop.permute.xlu0 %326
  %328 = vrot.lane.b32.xlu0 %v231, 31
  %v329 = vpop.permute.xlu0 %328
  %330 = vrot.lane.b32.xlu0 %v237, 31
  %v331 = vpop.permute.xlu0 %330
  %332 = vrot.lane.b32.xlu0 %v241, 31
  %v333 = vpop.permute.xlu0 %332
  %334 = vrot.lane.b32.xlu0 %v229, 31
  %v335 = vpop.permute.xlu0 %334
  %336 = vrot.lane.b32.xlu0 %v233, 31
  %v337 = vpop.permute.xlu0 %336
  %338 = vrot.lane.b32.xlu0 %v239, 31
  %v339 = vpop.permute.xlu0 %338
  %340 = vrot.lane.b32.xlu0 %v243, 31
  %v341 = vpop.permute.xlu0 %340
  %vm342 = vcmp.lt.s32.totalorder %v298, 31
  %v343 = vsel %vm342, %v327, %v335
  %v344 = vsel %vm342, %v329, %v337
  %v345 = vsel %vm342, %v331, %v339
  %v346 = vsel %vm342, %v333, %v341
  %v347 = vsel %vm342, %v335, %v327
  %v348 = vsel %vm342, %v337, %v329
  %v349 = vsel %vm342, %v339, %v331
  %v350 = vsel %vm342, %v341, %v333
  %351 = vrot.lane.b32.xlu0 %v227, 127
  %v352 = vpop.permute.xlu0 %351
  %353 = vrot.lane.b32.xlu0 %v231, 127
  %v354 = vpop.permute.xlu0 %353
  %355 = vrot.lane.b32.xlu0 %v237, 127
  %v356 = vpop.permute.xlu0 %355
  %357 = vrot.lane.b32.xlu0 %v241, 127
  %v358 = vpop.permute.xlu0 %357
  %359 = vrot.lane.b32.xlu0 %v229, 127
  %v360 = vpop.permute.xlu0 %359
  %361 = vrot.lane.b32.xlu0 %v233, 127
  %v362 = vpop.permute.xlu0 %361
  %363 = vrot.lane.b32.xlu0 %v239, 127
  %v364 = vpop.permute.xlu0 %363
  %365 = vrot.lane.b32.xlu0 %v243, 127
  %v366 = vpop.permute.xlu0 %365
  %vm367 = vcmp.lt.s32.totalorder %v298, 127
  %v368 = vsel %vm367, %v352, %v360
  %v369 = vsel %vm367, %v354, %v362
  %v370 = vsel %vm367, %v356, %v364
  %v371 = vsel %vm367, %v358, %v366
  %v372 = vsel %vm367, %v360, %v352
  %v373 = vsel %vm367, %v362, %v354
  %v374 = vsel %vm367, %v364, %v356
  %v375 = vsel %vm367, %v366, %v358
  %v376 = vsel %vm324, %v347, %v368
  %v377 = vsel %vm325, %v343, %v372
  %v378 = vsel %vm324, %v348, %v369
  %v379 = vsel %vm325, %v344, %v373
  %v380 = vsel %vm324, %v349, %v370
  %v381 = vsel %vm325, %v345, %v374
  %v382 = vsel %vm324, %v350, %v371
  %v383 = vsel %vm325, %v346, %v375
  %vm384 = vcmp.eq.s32.totalorder %v322, 0
  %vm385 = vcmp.eq.s32.totalorder %v323, 0
  %386 = vrot.lane.b32.xlu0 %v227, 97
  %v387 = vpop.permute.xlu0 %386
  %388 = vrot.lane.b32.xlu0 %v231, 97
  %v389 = vpop.permute.xlu0 %388
  %390 = vrot.lane.b32.xlu0 %v237, 97
  %v391 = vpop.permute.xlu0 %390
  %392 = vrot.lane.b32.xlu0 %v241, 97
  %v393 = vpop.permute.xlu0 %392
  %394 = vrot.lane.b32.xlu0 %v229, 97
  %v395 = vpop.permute.xlu0 %394
  %396 = vrot.lane.b32.xlu0 %v233, 97
  %v397 = vpop.permute.xlu0 %396
  %398 = vrot.lane.b32.xlu0 %v239, 97
  %v399 = vpop.permute.xlu0 %398
  %400 = vrot.lane.b32.xlu0 %v243, 97
  %v401 = vpop.permute.xlu0 %400
  %vm402 = vcmp.lt.s32.totalorder %v298, 97
  %v403 = vsel %vm402, %v387, %v395
  %v404 = vsel %vm402, %v389, %v397
  %v405 = vsel %vm402, %v391, %v399
  %v406 = vsel %vm402, %v393, %v401
  %v407 = vsel %vm402, %v395, %v387
  %v408 = vsel %vm402, %v397, %v389
  %v409 = vsel %vm402, %v399, %v391
  %v410 = vsel %vm402, %v401, %v393
  %411 = vrot.lane.b32.xlu0 %v227, 1
  %v412 = vpop.permute.xlu0 %411
  %413 = vrot.lane.b32.xlu0 %v231, 1
  %v414 = vpop.permute.xlu0 %413
  %415 = vrot.lane.b32.xlu0 %v237, 1
  %v416 = vpop.permute.xlu0 %415
  %417 = vrot.lane.b32.xlu0 %v241, 1
  %v418 = vpop.permute.xlu0 %417
  %419 = vrot.lane.b32.xlu0 %v229, 1
  %v420 = vpop.permute.xlu0 %419
  %421 = vrot.lane.b32.xlu0 %v233, 1
  %v422 = vpop.permute.xlu0 %421
  %423 = vrot.lane.b32.xlu0 %v239, 1
  %v424 = vpop.permute.xlu0 %423
  %425 = vrot.lane.b32.xlu0 %v243, 1
  %v426 = vpop.permute.xlu0 %425
  %vm427 = vcmp.lt.s32.totalorder %v298, 1
  %v428 = vsel %vm427, %v412, %v420
  %v429 = vsel %vm427, %v414, %v422
  %v430 = vsel %vm427, %v416, %v424
  %v431 = vsel %vm427, %v418, %v426
  %v432 = vsel %vm427, %v420, %v412
  %v433 = vsel %vm427, %v422, %v414
  %v434 = vsel %vm427, %v424, %v416
  %v435 = vsel %vm427, %v426, %v418
  %v436 = vsel %vm384, %v403, %v432
  %v437 = vsel %vm385, %v407, %v428
  %v438 = vsel %vm384, %v404, %v433
  %v439 = vsel %vm385, %v408, %v429
  %v440 = vsel %vm384, %v405, %v434
  %v441 = vsel %vm385, %v409, %v430
  %v442 = vsel %vm384, %v406, %v435
  %v443 = vsel %vm385, %v410, %v431
  %v444 = vsub.f32 %v376, %v436
  %v445 = vsub.f32 %v377, %v437
  %v446 = vsub.f32 %v378, %v438
  %v447 = vsub.f32 %v379, %v439
  %v448 = vsub.f32 %v380, %v440
  %v449 = vsub.f32 %v381, %v441
  %v450 = vsub.f32 %v382, %v442
  %v451 = vsub.f32 %v383, %v443
  %v452 = vmul.f32 %v444, 0.5
  %v453 = vmul.f32 %v445, 0.5
  %v454 = vmul.f32 %v446, 0.5
  %v455 = vmul.f32 %v447, 0.5
  %v456 = vmul.f32 %v448, 0.5
  %v457 = vmul.f32 %v449, 0.5
  %v458 = vmul.f32 %v450, 0.5
  %v459 = vmul.f32 %v451, 0.5
  %460 = vrot.lane.b32.xlu0 %v227, 96
  %v461 = vpop.permute.xlu0 %460
  %462 = vrot.lane.b32.xlu0 %v231, 96
  %v463 = vpop.permute.xlu0 %462
  %464 = vrot.lane.b32.xlu0 %v237, 96
  %v465 = vpop.permute.xlu0 %464
  %466 = vrot.lane.b32.xlu0 %v241, 96
  %v467 = vpop.permute.xlu0 %466
  %468 = vrot.lane.b32.xlu0 %v229, 96
  %v469 = vpop.permute.xlu0 %468
  %470 = vrot.lane.b32.xlu0 %v233, 96
  %v471 = vpop.permute.xlu0 %470
  %472 = vrot.lane.b32.xlu0 %v239, 96
  %v473 = vpop.permute.xlu0 %472
  %474 = vrot.lane.b32.xlu0 %v243, 96
  %v475 = vpop.permute.xlu0 %474
  %vm476 = vcmp.lt.s32.totalorder %v298, 96
  %v477 = vsel %vm476, %v461, %v469
  %v478 = vsel %vm476, %v463, %v471
  %v479 = vsel %vm476, %v465, %v473
  %v480 = vsel %vm476, %v467, %v475
  %v481 = vsel %vm476, %v469, %v461
  %v482 = vsel %vm476, %v471, %v463
  %v483 = vsel %vm476, %v473, %v465
  %v484 = vsel %vm476, %v475, %v467
  %v485 = vsub.f32 %v477, %v227
  %v486 = vsub.f32 %v481, %v229
  %v487 = vsub.f32 %v478, %v231
  %v488 = vsub.f32 %v482, %v233
  %v489 = vsub.f32 %v479, %v237
  %v490 = vsub.f32 %v483, %v239
  %v491 = vsub.f32 %v480, %v241
  %v492 = vsub.f32 %v484, %v243
  %v493 = vmul.f32 %v452, %v452
  %v494 = vmul.f32 %v453, %v453
  %v495 = vmul.f32 %v454, %v454
  %v496 = vmul.f32 %v455, %v455
  %v497 = vmul.f32 %v456, %v456
  %v498 = vmul.f32 %v457, %v457
  %v499 = vmul.f32 %v458, %v458
  %v500 = vmul.f32 %v459, %v459
  %v501 = vmul.f32 %v289, %v289
  %v502 = vmul.f32 %v290, %v290
  %v503 = vmul.f32 %v291, %v291
  %v504 = vmul.f32 %v292, %v292
  %v505 = vmul.f32 %v293, %v293
  %v506 = vmul.f32 %v294, %v294
  %v507 = vmul.f32 %v295, %v295
  %v508 = vmul.f32 %v296, %v296
  %v509 = vadd.f32 %v493, %v501
  %v510 = vadd.f32 %v494, %v502
  %v511 = vadd.f32 %v495, %v503
  %v512 = vadd.f32 %v496, %v504
  %v513 = vadd.f32 %v497, %v505
  %v514 = vadd.f32 %v498, %v506
  %v515 = vadd.f32 %v499, %v507
  %v516 = vadd.f32 %v500, %v508
  %v517 = vadd.f32 %v509, 1e-06
  %v518 = vadd.f32 %v510, 1e-06
  %v519 = vadd.f32 %v511, 1e-06
  %v520 = vadd.f32 %v512, 1e-06
  %v521 = vadd.f32 %v513, 1e-06
  %v522 = vadd.f32 %v514, 1e-06
  %v523 = vadd.f32 %v515, 1e-06
  %v524 = vadd.f32 %v516, 1e-06
  %v525 = vrcp.pop %v517
  %v526 = vrcp.pop %v518
  %v527 = vrcp.pop %v519
  %v528 = vrcp.pop %v520
  %v529 = vrcp.pop %v521
  %v530 = vrcp.pop %v522
  %v531 = vrcp.pop %v523
  %v532 = vrcp.pop %v524
  %v533 = vmul.f32 %v452, %v485
  %v534 = vmul.f32 %v453, %v486
  %v535 = vmul.f32 %v454, %v487
  %v536 = vmul.f32 %v455, %v488
  %v537 = vmul.f32 %v456, %v489
  %v538 = vmul.f32 %v457, %v490
  %v539 = vmul.f32 %v458, %v491
  %v540 = vmul.f32 %v459, %v492
  %v541 = vsub.f32 0.0, %v533
  %v542 = vsub.f32 0.0, %v534
  %v543 = vsub.f32 0.0, %v535
  %v544 = vsub.f32 0.0, %v536
  %v545 = vsub.f32 0.0, %v537
  %v546 = vsub.f32 0.0, %v538
  %v547 = vsub.f32 0.0, %v539
  %v548 = vsub.f32 0.0, %v540
  %v549 = vmul.f32 %v541, %v525
  %v550 = vmul.f32 %v542, %v526
  %v551 = vmul.f32 %v543, %v527
  %v552 = vmul.f32 %v544, %v528
  %v553 = vmul.f32 %v545, %v529
  %v554 = vmul.f32 %v546, %v530
  %v555 = vmul.f32 %v547, %v531
  %v556 = vmul.f32 %v548, %v532
  %v557 = vmul.f32 %v289, %v485
  %v558 = vmul.f32 %v290, %v486
  %v559 = vmul.f32 %v291, %v487
  %v560 = vmul.f32 %v292, %v488
  %v561 = vmul.f32 %v293, %v489
  %v562 = vmul.f32 %v294, %v490
  %v563 = vmul.f32 %v295, %v491
  %v564 = vmul.f32 %v296, %v492
  %v565 = vsub.f32 0.0, %v557
  %v566 = vsub.f32 0.0, %v558
  %v567 = vsub.f32 0.0, %v559
  %v568 = vsub.f32 0.0, %v560
  %v569 = vsub.f32 0.0, %v561
  %v570 = vsub.f32 0.0, %v562
  %v571 = vsub.f32 0.0, %v563
  %v572 = vsub.f32 0.0, %v564
  %v573 = vmul.f32 %v565, %v525
  %v574 = vmul.f32 %v566, %v526
  %v575 = vmul.f32 %v567, %v527
  %v576 = vmul.f32 %v568, %v528
  %v577 = vmul.f32 %v569, %v529
  %v578 = vmul.f32 %v570, %v530
  %v579 = vmul.f32 %v571, %v531
  %v580 = vmul.f32 %v572, %v532
  %v581 = vmul.f32 %v549, %v549
  %v582 = vmul.f32 %v550, %v550
  %v583 = vmul.f32 %v551, %v551
  %v584 = vmul.f32 %v552, %v552
  %v585 = vmul.f32 %v553, %v553
  %v586 = vmul.f32 %v554, %v554
  %v587 = vmul.f32 %v555, %v555
  %v588 = vmul.f32 %v556, %v556
  %v589 = vmul.f32 %v573, %v573
  %v590 = vmul.f32 %v574, %v574
  %v591 = vmul.f32 %v575, %v575
  %v592 = vmul.f32 %v576, %v576
  %v593 = vmul.f32 %v577, %v577
  %v594 = vmul.f32 %v578, %v578
  %v595 = vmul.f32 %v579, %v579
  %v596 = vmul.f32 %v580, %v580
  %v597 = vadd.f32 %v581, %v589
  %v598 = vadd.f32 %v582, %v590
  %v599 = vadd.f32 %v583, %v591
  %v600 = vadd.f32 %v584, %v592
  %v601 = vadd.f32 %v585, %v593
  %v602 = vadd.f32 %v586, %v594
  %v603 = vadd.f32 %v587, %v595
  %v604 = vadd.f32 %v588, %v596
  %v605 = vrsqrt.pop %v597
  %v606 = vmul.f32 %v597, %v605
  %vm607 = vcmp.eq.f32.partialorder %v597, inf
  %v608 = vsel %vm607, %v597, %v606
  %vm609 = vcmp.eq.f32.partialorder %v597, 0.0
  %v610 = vand.u32 %v597, 2147483648
  %v611 = vsel %vm609, %v610, %v608
  %v612 = vrsqrt.pop %v598
  %v613 = vmul.f32 %v598, %v612
  %vm614 = vcmp.eq.f32.partialorder %v598, inf
  %v615 = vsel %vm614, %v598, %v613
  %vm616 = vcmp.eq.f32.partialorder %v598, 0.0
  %v617 = vand.u32 %v598, 2147483648
  %v618 = vsel %vm616, %v617, %v615
  %v619 = vrsqrt.pop %v599
  %v620 = vmul.f32 %v599, %v619
  %vm621 = vcmp.eq.f32.partialorder %v599, inf
  %v622 = vsel %vm621, %v599, %v620
  %vm623 = vcmp.eq.f32.partialorder %v599, 0.0
  %v624 = vand.u32 %v599, 2147483648
  %v625 = vsel %vm623, %v624, %v622
  %v626 = vrsqrt.pop %v600
  %v627 = vmul.f32 %v600, %v626
  %vm628 = vcmp.eq.f32.partialorder %v600, inf
  %v629 = vsel %vm628, %v600, %v627
  %vm630 = vcmp.eq.f32.partialorder %v600, 0.0
  %v631 = vand.u32 %v600, 2147483648
  %v632 = vsel %vm630, %v631, %v629
  %v633 = vrsqrt.pop %v601
  %v634 = vmul.f32 %v601, %v633
  %vm635 = vcmp.eq.f32.partialorder %v601, inf
  %v636 = vsel %vm635, %v601, %v634
  %vm637 = vcmp.eq.f32.partialorder %v601, 0.0
  %v638 = vand.u32 %v601, 2147483648
  %v639 = vsel %vm637, %v638, %v636
  %v640 = vrsqrt.pop %v602
  %v641 = vmul.f32 %v602, %v640
  %vm642 = vcmp.eq.f32.partialorder %v602, inf
  %v643 = vsel %vm642, %v602, %v641
  %vm644 = vcmp.eq.f32.partialorder %v602, 0.0
  %v645 = vand.u32 %v602, 2147483648
  %v646 = vsel %vm644, %v645, %v643
  %v647 = vrsqrt.pop %v603
  %v648 = vmul.f32 %v603, %v647
  %vm649 = vcmp.eq.f32.partialorder %v603, inf
  %v650 = vsel %vm649, %v603, %v648
  %vm651 = vcmp.eq.f32.partialorder %v603, 0.0
  %v652 = vand.u32 %v603, 2147483648
  %v653 = vsel %vm651, %v652, %v650
  %v654 = vrsqrt.pop %v604
  %v655 = vmul.f32 %v604, %v654
  %vm656 = vcmp.eq.f32.partialorder %v604, inf
  %v657 = vsel %vm656, %v604, %v655
  %vm658 = vcmp.eq.f32.partialorder %v604, 0.0
  %v659 = vand.u32 %v604, 2147483648
  %v660 = vsel %vm658, %v659, %v657
  %v661 = vsub.f32 %v549, 0.485
  %v662 = vsub.f32 %v550, 0.485
  %v663 = vsub.f32 %v551, 0.485
  %v664 = vsub.f32 %v552, 0.485
  %v665 = vsub.f32 %v553, 0.485
  %v666 = vsub.f32 %v554, 0.485
  %v667 = vsub.f32 %v555, 0.485
  %v668 = vsub.f32 %v556, 0.485
  %v669 = vmul.f32 %v661, 4.366812
  %v670 = vmul.f32 %v662, 4.366812
  %v671 = vmul.f32 %v663, 4.366812
  %v672 = vmul.f32 %v664, 4.366812
  %v673 = vmul.f32 %v665, 4.366812
  %v674 = vmul.f32 %v666, 4.366812
  %v675 = vmul.f32 %v667, 4.366812
  %v676 = vmul.f32 %v668, 4.366812
  %677 = vst [vmem:[%s3] sm:$0xff] %v669
  %678 = vst [vmem:[%s3 + $0x8] sm:$0xff] %v670
  %679 = vst [vmem:[%s3 + $0x10] sm:$0xff] %v671
  %680 = vst [vmem:[%s3 + $0x18] sm:$0xff] %v672
  %681 = vst [vmem:[%s3 + $0x20] sm:$0xff] %v673
  %682 = vst [vmem:[%s3 + $0x28] sm:$0xff] %v674
  %683 = vst [vmem:[%s3 + $0x30] sm:$0xff] %v675
  %684 = vst [vmem:[%s3 + $0x38] sm:$0xff] %v676
  %v685 = vsub.f32 %v573, 0.456
  %v686 = vsub.f32 %v574, 0.456
  %v687 = vsub.f32 %v575, 0.456
  %v688 = vsub.f32 %v576, 0.456
  %v689 = vsub.f32 %v577, 0.456
  %v690 = vsub.f32 %v578, 0.456
  %v691 = vsub.f32 %v579, 0.456
  %v692 = vsub.f32 %v580, 0.456
  %v693 = vmul.f32 %v685, 4.464286
  %v694 = vmul.f32 %v686, 4.464286
  %v695 = vmul.f32 %v687, 4.464286
  %v696 = vmul.f32 %v688, 4.464286
  %v697 = vmul.f32 %v689, 4.464286
  %v698 = vmul.f32 %v690, 4.464286
  %v699 = vmul.f32 %v691, 4.464286
  %v700 = vmul.f32 %v692, 4.464286
  %s701 = scalar_lea.vmem %s3, 64
  %702 = vst [vmem:[%s701] sm:$0xff] %v693
  %703 = vst [vmem:[%s701 + $0x8] sm:$0xff] %v694
  %704 = vst [vmem:[%s701 + $0x10] sm:$0xff] %v695
  %705 = vst [vmem:[%s701 + $0x18] sm:$0xff] %v696
  %706 = vst [vmem:[%s701 + $0x20] sm:$0xff] %v697
  %707 = vst [vmem:[%s701 + $0x28] sm:$0xff] %v698
  %708 = vst [vmem:[%s701 + $0x30] sm:$0xff] %v699
  %709 = vst [vmem:[%s701 + $0x38] sm:$0xff] %v700
  %v710 = vsub.f32 %v611, 0.406
  %v711 = vsub.f32 %v618, 0.406
  %v712 = vsub.f32 %v625, 0.406
  %v713 = vsub.f32 %v632, 0.406
  %v714 = vsub.f32 %v639, 0.406
  %v715 = vsub.f32 %v646, 0.406
  %v716 = vsub.f32 %v653, 0.406
  %v717 = vsub.f32 %v660, 0.406
  %v718 = vmul.f32 %v710, 4.4444447
  %v719 = vmul.f32 %v711, 4.4444447
  %v720 = vmul.f32 %v712, 4.4444447
  %v721 = vmul.f32 %v713, 4.4444447
  %v722 = vmul.f32 %v714, 4.4444447
  %v723 = vmul.f32 %v715, 4.4444447
  %v724 = vmul.f32 %v716, 4.4444447
  %v725 = vmul.f32 %v717, 4.4444447
  %s726 = scalar_lea.vmem %s3, 128
  %727 = vst [vmem:[%s726] sm:$0xff] %v718
  %728 = vst [vmem:[%s726 + $0x8] sm:$0xff] %v719
  %729 = vst [vmem:[%s726 + $0x10] sm:$0xff] %v720
  %730 = vst [vmem:[%s726 + $0x18] sm:$0xff] %v721
  %731 = vst [vmem:[%s726 + $0x20] sm:$0xff] %v722
  %732 = vst [vmem:[%s726 + $0x28] sm:$0xff] %v723
  %733 = vst [vmem:[%s726 + $0x30] sm:$0xff] %v724
  %734 = vst [vmem:[%s726 + $0x38] sm:$0xff] %v725
  // Predicated region
  $region14: #{casme2_optical_transform.1} parent=0 // pred_check
    _
  $region15: #{casme2_optical_transform.1} parent=0 // pred_check_branch
    %736 = sbr.rel (0) target = $region17
  $region16: #{casme2_optical_transform.1} parent=0 // pred_region
    _
  $region17: #{casme2_optical_transform.1} parent=0 // pred_fallthru
    _
  // Predicated region
  $region18: #{casme2_optical_transform.1} parent=0 // pred_check
    _
  $region19: #{casme2_optical_transform.1} parent=0 // pred_check_branch
    %738 = sbr.rel (0) target = $region21
  $region20: #{casme2_optical_transform.1} parent=0 // pred_region
    _
  $region21: #{casme2_optical_transform.1} parent=0 // pred_fallthru
    _

</llo_original>
